<compile_context>
chip_gen: v6e
topology: v6e:2x2x1
jax: 0.10.0
libtpu: 0.0.40
codegen_flags: <defaults>
</compile_context>

<pallas_src>
import jax
import jax.numpy as jnp
from jax.experimental import pallas as pl
from jax.experimental.pallas import tpu as pltpu


# ---------------------------------------------------------------------------
# Kernel: one batch tile, both Q heads fused into a single 128-wide MLP.
# ---------------------------------------------------------------------------
def twinned_q_kernel(x_ref, w1_ref, b1_ref, w2_ref, b2_ref, w3t_ref, b3_ref,
                     q_ref):
    # Layer 1: single fused matmul over the concatenated [states|actions] tile.
    h = (jnp.dot(x_ref[...], w1_ref[...], preferred_element_type=jnp.float32)
         + b1_ref[...])
    h = jnp.maximum(h, 0.01 * h)                      # LeakyReLU(0.01)

    # Layer 2: block-diagonal packed twin heads -> one full 128-lane MXU tile.
    w2 = w2_ref[...]
    h = (jnp.dot(h.astype(w2.dtype), w2, preferred_element_type=jnp.float32)
         + b2_ref[...])
    h = jnp.maximum(h, 0.01 * h)

    # Layer 3: only 2 useful output lanes, so skip the MXU entirely.
    # VPU multiply + XLU lane-reduce per head (slots idle while MXU is busy).
    w3t = w3t_ref[...]                                # (2, 128) f32
    b3 = b3_ref[...]                                  # (1, 2)   f32
    q_ref[:, 0:1] = (jnp.sum(h * w3t[0:1, :], axis=-1, keepdims=True)
                     + b3[:, 0:1])
    q_ref[:, 1:2] = (jnp.sum(h * w3t[1:2, :], axis=-1, keepdims=True)
                     + b3[:, 1:2])


# ---------------------------------------------------------------------------
# Parameter init (torch.nn.Linear-style) and twin-head packing.
# ---------------------------------------------------------------------------
def init_q_params(key, in_dim, hidden=64, out_dim=1):
    """Per-head params: (w1,b1,w2,b2,w3,b3) with w as (in,out), b as (1,out)."""
    dims = [(in_dim, hidden), (hidden, hidden), (hidden, out_dim)]
    params = []
    for (fan_in, fan_out) in dims:
        key, kw, kb = jax.random.split(key, 3)
        bound = 1.0 / jnp.sqrt(float(fan_in))
        w = jax.random.uniform(kw, (fan_in, fan_out), jnp.float32, -bound, bound)
        b = jax.random.uniform(kb, (1, fan_out), jnp.float32, -bound, bound)
        params.extend([w, b])
    return key, params


def _block_diag(a, b):
    (m1, n1), (m2, n2) = a.shape, b.shape
    out = jnp.zeros((m1 + m2, n1 + n2), a.dtype)
    out = out.at[:m1, :n1].set(a)
    out = out.at[m1:, n1:].set(b)
    return out


def pack_twin_params(params1, params2, compute_dtype=jnp.bfloat16):
    """Pack two independent 64-wide heads into one 128-wide stack (done once).

    Matmul weights are stored in `compute_dtype` (bf16 by default: MXU-native
    on v5e/v6e/v7x); biases and the layer-3 readout stay f32 since they are
    applied on the VPU with f32 accumulators.
    """
    w1a, b1a, w2a, b2a, w3a, b3a = params1
    w1b, b1b, w2b, b2b, w3b, b3b = params2
    # Layer 1: concat along the output axis.
    w1 = jnp.concatenate([w1a, w1b], axis=1).astype(compute_dtype)   # (in, 128)
    b1 = jnp.concatenate([b1a, b1b], axis=1).astype(jnp.float32)     # (1, 128)
    # Layer 2: block diagonal so the two heads never mix.
    w2 = _block_diag(w2a, w2b).astype(compute_dtype)                 # (128, 128)
    b2 = jnp.concatenate([b2a, b2b], axis=1).astype(jnp.float32)     # (1, 128)
    # Layer 3: block diagonal, transposed for the VPU/XLU readout path.
    w3t = _block_diag(w3a, w3b).T.astype(jnp.float32)                # (2, 128)
    b3 = jnp.concatenate([b3a, b3b], axis=1).astype(jnp.float32)     # (1, 2)
    return (w1, b1, w2, b2, w3t, b3)


# ---------------------------------------------------------------------------
# Wrapper: batch-tiled grid, weights resident in VMEM.
# ---------------------------------------------------------------------------
def _tile_rows(batch, max_tile):
    """Pick the batch-tile size: multiple of 8, large enough to amortize
    per-grid-step overhead, small enough to give >=2 grid steps (v7x megacore)
    when the batch allows it."""
    max_tile = max(8, (max_tile // 8) * 8)            # defensive (8,128) rule
    if batch > max_tile:
        return max_tile
    half = (batch + 1) // 2
    tb = ((half + 7) // 8) * 8
    if tb >= batch:
        tb = batch            # single full-batch tile (block == full dim: legal)
    return tb


def twinned_q_forward(states, actions, packed_params, *, max_tile=8192):
    w1, b1, w2, b2, w3t, b3 = packed_params
    compute_dtype = w1.dtype

    # One contiguous (batch, num_inputs+num_actions) operand for the fused
    # layer-1 matmul (negligible extra bytes vs. the per-row FLOPs).
    x = jnp.concatenate([states, actions], axis=-1).astype(compute_dtype)
    batch, feat = x.shape

    tb = _tile_rows(batch, max_tile)
    grid = (pl.cdiv(batch, tb),)

    def const_spec(arr):
        # Constant index_map -> block stays resident in VMEM across grid steps.
        return pl.BlockSpec(arr.shape, lambda i: (0, 0))

    q = pl.pallas_call(
        twinned_q_kernel,
        out_shape=jax.ShapeDtypeStruct((batch, 2), jnp.float32),
        grid=grid,
        in_specs=[
            pl.BlockSpec((tb, feat), lambda i: (i, 0)),
            const_spec(w1), const_spec(b1),
            const_spec(w2), const_spec(b2),
            const_spec(w3t), const_spec(b3),
        ],
        out_specs=pl.BlockSpec((tb, 2), lambda i: (i, 0)),
        compiler_params=pltpu.CompilerParams(
            dimension_semantics=("parallel",)),
    )(x, w1, b1, w2, b2, w3t, b3)

    return q[:, 0:1], q[:, 1:2]


# ---------------------------------------------------------------------------
# Pure-JAX reference of the PyTorch forward (unpacked, f32).
# ---------------------------------------------------------------------------
def _leaky_relu_ref(x, slope=0.01):
    return jnp.where(x > 0, x, slope * x)


def reference_forward(states, actions, params1, params2):
    x = jnp.concatenate([states, actions], axis=-1).astype(jnp.float32)

    def mlp(p):
        w1, b1, w2, b2, w3, b3 = p
        h = _leaky_relu_ref(x @ w1 + b1)
        h = _leaky_relu_ref(h @ w2 + b2)
        return h @ w3 + b3

    return mlp(params1), mlp(params2)


if __name__ == "__main__":
    num_inputs = 12
    num_actions = 4
    batch = 8

    key = jax.random.PRNGKey(0)
    key, k_s, k_a = jax.random.split(key, 3)
    states = jax.random.normal(k_s, (batch, num_inputs), jnp.float32)
    actions = jax.random.normal(k_a, (batch, num_actions), jnp.float32)

    key, params1 = init_q_params(key, num_inputs + num_actions)
    key, params2 = init_q_params(key, num_inputs + num_actions)

    r1, r2 = reference_forward(states, actions, params1, params2)

    # f32 path: exact check against the reference.
    packed_f32 = pack_twin_params(params1, params2, compute_dtype=jnp.float32)
    q1, q2 = twinned_q_forward(states, actions, packed_f32)
    q1 = jax.block_until_ready(q1)
    q2 = jax.block_until_ready(q2)
    assert q1.shape == (batch, 1) and q2.shape == (batch, 1)
    assert jnp.allclose(q1, r1, atol=1e-5, rtol=1e-5)
    assert jnp.allclose(q2, r2, atol=1e-5, rtol=1e-5)

    # bf16-operand path (default for perf): loose tolerance vs. f32 reference.
    packed_bf16 = pack_twin_params(params1, params2, compute_dtype=jnp.bfloat16)
    q1b, q2b = twinned_q_forward(states, actions, packed_bf16)
    q1b = jax.block_until_ready(q1b)
    q2b = jax.block_until_ready(q2b)
    assert q1b.shape == (batch, 1) and q2b.shape == (batch, 1)
    assert jnp.allclose(q1b, r1, atol=5e-2, rtol=5e-2)
    assert jnp.allclose(q2b, r2, atol=5e-2, rtol=5e-2)

    print("KERNEL_OK")
</pallas_src>

<mosaic_0001>
module attributes {stable_mosaic.version = 11 : i64} {
  func.func @twinned_q_kernel(%arg0: i32, %arg1: memref<8x16xf32, #tpu.memory_space<vmem>>, %arg2: memref<16x128xf32, #tpu.memory_space<vmem>>, %arg3: memref<1x128xf32, #tpu.memory_space<vmem>>, %arg4: memref<128x128xf32, #tpu.memory_space<vmem>>, %arg5: memref<1x128xf32, #tpu.memory_space<vmem>>, %arg6: memref<2x128xf32, #tpu.memory_space<vmem>>, %arg7: memref<1x2xf32, #tpu.memory_space<vmem>>, %arg8: memref<8x2xf32, #tpu.memory_space<vmem>>) attributes {dimension_semantics = [#tpu.dimension_semantics<parallel>], iteration_bounds = array<i64: 1>, scalar_prefetch = 0 : i64, scratch_operands = 0 : i64, tpu.core_type = #tpu.core_type<tc>, window_params = [{transform_indices = @transform_0, window_bounds = array<i64: 8, 16>}, {pipeline_mode = #tpu.pipeline_mode<synchronous>, transform_indices = @transform_1, window_bounds = array<i64: 16, 128>}, {pipeline_mode = #tpu.pipeline_mode<synchronous>, transform_indices = @transform_2, window_bounds = array<i64: 1, 128>}, {pipeline_mode = #tpu.pipeline_mode<synchronous>, transform_indices = @transform_3, window_bounds = array<i64: 128, 128>}, {pipeline_mode = #tpu.pipeline_mode<synchronous>, transform_indices = @transform_4, window_bounds = array<i64: 1, 128>}, {pipeline_mode = #tpu.pipeline_mode<synchronous>, transform_indices = @transform_5, window_bounds = array<i64: 2, 128>}, {pipeline_mode = #tpu.pipeline_mode<synchronous>, transform_indices = @transform_6, window_bounds = array<i64: 1, 2>}, {transform_indices = @transform_7, window_bounds = array<i64: 8, 2>}]} {
    %c0 = arith.constant 0 : index
    %c0_0 = arith.constant 0 : index
    %0 = vector.load %arg1[%c0, %c0_0] : memref<8x16xf32, #tpu.memory_space<vmem>>, vector<8x16xf32>
    %c0_1 = arith.constant 0 : index
    %c0_2 = arith.constant 0 : index
    %1 = vector.load %arg2[%c0_1, %c0_2] : memref<16x128xf32, #tpu.memory_space<vmem>>, vector<16x128xf32>
    %cst = arith.constant dense<0.000000e+00> : vector<8x128xf32>
    %2 = tpu.matmul %0, %1, %cst {dimension_numbers = #tpu.dot_dimension_numbers<[1], [0], [0], [1], [0, 0, 1, 1], [], []>} : vector<8x16xf32>, vector<16x128xf32>, vector<8x128xf32> -> vector<8x128xf32>
    %c0_3 = arith.constant 0 : index
    %c0_4 = arith.constant 0 : index
    %3 = vector.load %arg3[%c0_3, %c0_4] : memref<1x128xf32, #tpu.memory_space<vmem>>, vector<1x128xf32>
    %4 = vector.broadcast %3 : vector<1x128xf32> to vector<8x128xf32>
    %5 = arith.addf %2, %4 : vector<8x128xf32>
    %cst_5 = arith.constant 0.00999999977 : f32
    %6 = vector.broadcast %cst_5 : f32 to vector<8x128xf32>
    %7 = arith.mulf %6, %5 : vector<8x128xf32>
    %8 = arith.maximumf %5, %7 : vector<8x128xf32>
    %c0_6 = arith.constant 0 : index
    %c0_7 = arith.constant 0 : index
    %9 = vector.load %arg4[%c0_6, %c0_7] : memref<128x128xf32, #tpu.memory_space<vmem>>, vector<128x128xf32>
    %cst_8 = arith.constant dense<0.000000e+00> : vector<8x128xf32>
    %10 = tpu.matmul %8, %9, %cst_8 {dimension_numbers = #tpu.dot_dimension_numbers<[1], [0], [0], [1], [0, 0, 1, 1], [], []>} : vector<8x128xf32>, vector<128x128xf32>, vector<8x128xf32> -> vector<8x128xf32>
    %c0_9 = arith.constant 0 : index
    %c0_10 = arith.constant 0 : index
    %11 = vector.load %arg5[%c0_9, %c0_10] : memref<1x128xf32, #tpu.memory_space<vmem>>, vector<1x128xf32>
    %12 = vector.broadcast %11 : vector<1x128xf32> to vector<8x128xf32>
    %13 = arith.addf %10, %12 : vector<8x128xf32>
    %cst_11 = arith.constant 0.00999999977 : f32
    %14 = vector.broadcast %cst_11 : f32 to vector<8x128xf32>
    %15 = arith.mulf %14, %13 : vector<8x128xf32>
    %16 = arith.maximumf %13, %15 : vector<8x128xf32>
    %c0_12 = arith.constant 0 : index
    %c0_13 = arith.constant 0 : index
    %17 = vector.load %arg6[%c0_12, %c0_13] : memref<2x128xf32, #tpu.memory_space<vmem>>, vector<2x128xf32>
    %c0_14 = arith.constant 0 : index
    %c0_15 = arith.constant 0 : index
    %18 = vector.load %arg7[%c0_14, %c0_15] : memref<1x2xf32, #tpu.memory_space<vmem>>, vector<1x2xf32>
    %19 = vector.extract_strided_slice %17 {offsets = [0, 0], sizes = [1, 128], strides = [1, 1]} : vector<2x128xf32> to vector<1x128xf32>
    %20 = vector.broadcast %19 : vector<1x128xf32> to vector<8x128xf32>
    %21 = arith.mulf %16, %20 : vector<8x128xf32>
    %cst_16 = arith.constant dense<0.000000e+00> : vector<8xf32>
    %22 = vector.multi_reduction <add>, %21, %cst_16 [1] : vector<8x128xf32> to vector<8xf32>
    %23 = vector.shape_cast %22 : vector<8xf32> to vector<8x1xf32>
    %24 = vector.extract_strided_slice %18 {offsets = [0, 0], sizes = [1, 1], strides = [1, 1]} : vector<1x2xf32> to vector<1x1xf32>
    %25 = vector.broadcast %24 : vector<1x1xf32> to vector<8x1xf32>
    %26 = arith.addf %23, %25 : vector<8x1xf32>
    %c0_17 = arith.constant 0 : index
    %c0_18 = arith.constant 0 : index
    %27 = vector.load %arg8[%c0_17, %c0_18] : memref<8x2xf32, #tpu.memory_space<vmem>>, vector<8x1xf32>
    tpu.vector_store %arg8[%c0_17, %c0_18], %26 {strides = array<i32>} : memref<8x2xf32, #tpu.memory_space<vmem>>, vector<8x1xf32>,
    %28 = vector.extract_strided_slice %17 {offsets = [1, 0], sizes = [1, 128], strides = [1, 1]} : vector<2x128xf32> to vector<1x128xf32>
    %29 = vector.broadcast %28 : vector<1x128xf32> to vector<8x128xf32>
    %30 = arith.mulf %16, %29 : vector<8x128xf32>
    %cst_19 = arith.constant dense<0.000000e+00> : vector<8xf32>
    %31 = vector.multi_reduction <add>, %30, %cst_19 [1] : vector<8x128xf32> to vector<8xf32>
    %32 = vector.shape_cast %31 : vector<8xf32> to vector<8x1xf32>
    %33 = vector.extract_strided_slice %18 {offsets = [0, 1], sizes = [1, 1], strides = [1, 1]} : vector<1x2xf32> to vector<1x1xf32>
    %34 = vector.broadcast %33 : vector<1x1xf32> to vector<8x1xf32>
    %35 = arith.addf %32, %34 : vector<8x1xf32>
    %c0_20 = arith.constant 0 : index
    %c1 = arith.constant 1 : index
    %36 = vector.load %arg8[%c0_20, %c1] : memref<8x2xf32, #tpu.memory_space<vmem>>, vector<8x1xf32>
    tpu.vector_store %arg8[%c0_20, %c1], %35 {strides = array<i32>} : memref<8x2xf32, #tpu.memory_space<vmem>>, vector<8x1xf32>,
    return
  }
  func.func @transform_0(%arg0: i32) -> (i32, i32) {
    %c0_i32 = arith.constant 0 : i32
    %c0_i32_0 = arith.constant 0 : i32
    return %arg0, %c0_i32 : i32, i32
  }
  func.func @transform_1(%arg0: i32) -> (i32, i32) {
    %c0_i32 = arith.constant 0 : i32
    %c0_i32_0 = arith.constant 0 : i32
    %c0_i32_1 = arith.constant 0 : i32
    return %c0_i32, %c0_i32_0 : i32, i32
  }
  func.func @transform_2(%arg0: i32) -> (i32, i32) {
    %c0_i32 = arith.constant 0 : i32
    %c0_i32_0 = arith.constant 0 : i32
    %c0_i32_1 = arith.constant 0 : i32
    return %c0_i32, %c0_i32_0 : i32, i32
  }
  func.func @transform_3(%arg0: i32) -> (i32, i32) {
    %c0_i32 = arith.constant 0 : i32
    %c0_i32_0 = arith.constant 0 : i32
    %c0_i32_1 = arith.constant 0 : i32
    return %c0_i32, %c0_i32_0 : i32, i32
  }
  func.func @transform_4(%arg0: i32) -> (i32, i32) {
    %c0_i32 = arith.constant 0 : i32
    %c0_i32_0 = arith.constant 0 : i32
    %c0_i32_1 = arith.constant 0 : i32
    return %c0_i32, %c0_i32_0 : i32, i32
  }
  func.func @transform_5(%arg0: i32) -> (i32, i32) {
    %c0_i32 = arith.constant 0 : i32
    %c0_i32_0 = arith.constant 0 : i32
    %c0_i32_1 = arith.constant 0 : i32
    return %c0_i32, %c0_i32_0 : i32, i32
  }
  func.func @transform_6(%arg0: i32) -> (i32, i32) {
    %c0_i32 = arith.constant 0 : i32
    %c0_i32_0 = arith.constant 0 : i32
    %c0_i32_1 = arith.constant 0 : i32
    return %c0_i32, %c0_i32_0 : i32, i32
  }
  func.func @transform_7(%arg0: i32) -> (i32, i32) {
    %c0_i32 = arith.constant 0 : i32
    %c0_i32_0 = arith.constant 0 : i32
    return %arg0, %c0_i32 : i32, i32
  }
}

</mosaic_0001>

<llo_original>
// kernel: tpu_custom_call.1
$region0: #{tpu_custom_call.1}
  #allocation0 [shape = 'u32[]', space=smem, size = 0x4, offset = 0x4, fixed_abs, tag = 'smem constant byte address 0x4 - core index']
  #allocation1 [shape = 'u32[144,128]{1,0:T(1,128)}', space=vmem, size = 0x12000, scoped, tag = 'internal scratch']
  %s0 = inlined_call_operand.hbm [shape: f32[8,16], index: 0, kind: input, shape index: {}]
  %s1 = inlined_call_operand.hbm [shape: f32[16,128], index: 1, kind: input, shape index: {}]
  %s2 = inlined_call_operand.vmem [shape: f32[1,128], index: 2, kind: input, shape index: {}]
  %s3 = inlined_call_operand.hbm [shape: f32[128,128], index: 3, kind: input, shape index: {}]
  %s4 = inlined_call_operand.vmem [shape: f32[1,128], index: 4, kind: input, shape index: {}]
  %s5 = inlined_call_operand.vmem [shape: f32[2,128], index: 5, kind: input, shape index: {}]
  %s6 = inlined_call_operand.vmem [shape: f32[1,2], index: 6, kind: input, shape index: {}]
  %s7 = inlined_call_operand.vmem [shape: f32[8,2], index: 7, kind: output, shape index: {}]
  %s8 = sld [smem:[#allocation0]]
  $region50: #{tpu_custom_call.1} parent=0
    _
  %s10 = ssub.s32 1, %s8
  %s11 = scalar_select 0, %s10, %s8
  $region1: #{tpu_custom_call.1} parent=0
    #allocation2 [shape = 'u8[4096]{0}', space=vmem, size = 0x1000, scoped, tag = 'input window, operand 0, single buffered']
    #allocation3 [shape = 's32[1]{0}', space=sflag, size = 0x4, scoped, tag = 'scoped memory for tpu_custom_call.1']
    #allocation4 [shape = 'u8[8192]{0}', space=vmem, size = 0x2000, scoped, tag = 'input window, operand 1, single buffered']
    #allocation5 [shape = 's32[1]{0}', space=sflag, size = 0x4, scoped, tag = 'scoped memory for tpu_custom_call.1']
    #allocation6 [shape = 'u8[65536]{0}', space=vmem, size = 0x10000, scoped, tag = 'input window, operand 3, single buffered']
    %12 = vsyncpa [#allocation3], 0
    %13 = vsyncpa [#allocation5], 0
    // Predicated region
    $region2: #{tpu_custom_call.1} parent=1 // pred_check
      _
    $region3: #{tpu_custom_call.1} parent=1 // pred_check_branch
      %15 = sbr.rel (0) target = $region5
    $region4: #{tpu_custom_call.1} parent=1 // pred_region
      %s17 = ssub.s32 128, 128
      %18 = vsyncadd [#allocation3], %s17
      %s20 = sshll.u32 [#allocation2], 4
      %s21 = int_to_ptr.vmem [resolvable:$true] %s20
      %23 = dma.hbm_to_vmem [thread:$0]  %s0, 128, %s21, [#allocation3]
    $region5: #{tpu_custom_call.1} parent=1 // pred_fallthru
      _
    // Predicated region
    $region6: #{tpu_custom_call.1} parent=1 // pred_check
      _
    $region7: #{tpu_custom_call.1} parent=1 // pred_check_branch
      %25 = sbr.rel (0) target = $region9
    $region8: #{tpu_custom_call.1} parent=1 // pred_region
      %s27 = ssub.s32 256, 256
      %28 = vsyncadd [#allocation5], %s27
      %s29 = sshll.u32 [#allocation4], 4
      %s30 = int_to_ptr.vmem [resolvable:$true] %s29
      %35 = dma.hbm_to_vmem [thread:$0]  %s1, 256, %s30, [#allocation5], 128, 128, 8
    $region9: #{tpu_custom_call.1} parent=1 // pred_fallthru
      _
    // Predicated region
    $region10: #{tpu_custom_call.1} parent=1 // pred_check
      _
    $region11: #{tpu_custom_call.1} parent=1 // pred_check_branch
      %37 = sbr.rel (0) target = $region13
    $region12: #{tpu_custom_call.1} parent=1 // pred_region
      _
    $region13: #{tpu_custom_call.1} parent=1 // pred_fallthru
      _
    // Predicated region
    $region14: #{tpu_custom_call.1} parent=1 // pred_check
      _
    $region15: #{tpu_custom_call.1} parent=1 // pred_check_branch
      %39 = sbr.rel (0) target = $region17
    $region16: #{tpu_custom_call.1} parent=1 // pred_region
      %s41 = ssub.s32 2048, 2048
      %42 = vsyncadd [#allocation5], %s41
      %s43 = sshll.u32 [#allocation6], 4
      %s44 = int_to_ptr.vmem [resolvable:$true] %s43
      %49 = dma.hbm_to_vmem [thread:$0]  %s3, 2048, %s44, [#allocation5], 128, 128, 8
    $region17: #{tpu_custom_call.1} parent=1 // pred_fallthru
      _
    // Predicated region
    $region18: #{tpu_custom_call.1} parent=1 // pred_check
      _
    $region19: #{tpu_custom_call.1} parent=1 // pred_check_branch
      %51 = sbr.rel (0) target = $region21
    $region20: #{tpu_custom_call.1} parent=1 // pred_region
      _
    $region21: #{tpu_custom_call.1} parent=1 // pred_fallthru
      _
    // Predicated region
    $region22: #{tpu_custom_call.1} parent=1 // pred_check
      _
    $region23: #{tpu_custom_call.1} parent=1 // pred_check_branch
      %53 = sbr.rel (0) target = $region25
    $region24: #{tpu_custom_call.1} parent=1 // pred_region
      _
    $region25: #{tpu_custom_call.1} parent=1 // pred_fallthru
      _
    // Predicated region
    $region26: #{tpu_custom_call.1} parent=1 // pred_check
      _
    $region27: #{tpu_custom_call.1} parent=1 // pred_check_branch
      %55 = sbr.rel (0) target = $region29
    $region28: #{tpu_custom_call.1} parent=1 // pred_region
      _
    $region29: #{tpu_custom_call.1} parent=1 // pred_fallthru
      _
    // Predicated region
    $region30: #{tpu_custom_call.1} parent=1 // pred_check
      _
    $region31: #{tpu_custom_call.1} parent=1 // pred_check_branch
      %57 = sbr.rel (0) target = $region33
    $region32: #{tpu_custom_call.1} parent=1 // pred_region
      %58 = dma.done [#allocation3], 128
    $region33: #{tpu_custom_call.1} parent=1 // pred_fallthru
      _
    // Predicated region
    $region34: #{tpu_custom_call.1} parent=1 // pred_check
      _
    $region35: #{tpu_custom_call.1} parent=1 // pred_check_branch
      %60 = sbr.rel (0) target = $region37
    $region36: #{tpu_custom_call.1} parent=1 // pred_region
      %61 = dma.done [#allocation5], 256
    $region37: #{tpu_custom_call.1} parent=1 // pred_fallthru
      _
    // Predicated region
    $region38: #{tpu_custom_call.1} parent=1 // pred_check
      _
    $region39: #{tpu_custom_call.1} parent=1 // pred_check_branch
      %63 = sbr.rel (0) target = $region41
    $region40: #{tpu_custom_call.1} parent=1 // pred_region
      %64 = dma.done [#allocation5], 2048
    $region41: #{tpu_custom_call.1} parent=1 // pred_fallthru
      _
    %v65 = vld [vmem:[#allocation2] sm:$0xff]
    %v66 = vld [vmem:[#allocation4] sm:$0xff]
    %v67 = vld [vmem:[#allocation4 + $0x8] sm:$0xff]
    %v68 = vld [vmem:[%s2] sm:$0x1]
    %v70 = vlaneseq
    %v71 = vshrl.u32 %v70, 7
    %v72 = vsub.s32 0, %v71
    %v73 = vrot.slane %v68, %v72
    %vm75 = vcmask 130048
    %v77 = vsel %vm75, %v65, 0
    %79 = vmatprep.subr.mxu0 0.0
    %80 = vmatpush1.msra.mxu0 0.0
    %81 = vmatprep.subr.mxu0 0.0
    %82 = vmatpush1.msra.mxu0 0.0
    %83 = vmatprep.subr.mxu0 0.0
    %84 = vmatpush1.msra.mxu0 0.0
    %85 = vmatprep.subr.mxu0 0.0
    %86 = vmatpush1.msra.mxu0 0.0
    %87 = vmatprep.subr.mxu0 0.0
    %88 = vmatpush1.msra.mxu0 0.0
    %89 = vmatprep.subr.mxu0 0.0
    %90 = vmatpush1.msra.mxu0 0.0
    %91 = vmatprep.subr.mxu0 0.0
    %92 = vmatpush1.msra.mxu0 0.0
    %93 = vmatprep.subr.mxu0 0.0
    %94 = vmatpush1.msra.mxu0 0.0
    %95 = vmatprep.subr.mxu0 0.0
    %96 = vmatpush1.msra.mxu0 0.0
    %97 = vmatprep.subr.mxu0 0.0
    %98 = vmatpush1.msra.mxu0 0.0
    %99 = vmatprep.subr.mxu0 0.0
    %100 = vmatpush1.msra.mxu0 0.0
    %101 = vmatprep.subr.mxu0 0.0
    %102 = vmatpush1.msra.mxu0 0.0
    %103 = vmatprep.subr.mxu0 0.0
    %104 = vmatpush1.msra.mxu0 0.0
    %105 = vmatprep.subr.mxu0 0.0
    %106 = vmatpush1.msra.mxu0 0.0
    %107 = vmatprep.subr.mxu0 0.0
    %108 = vmatpush1.msra.mxu0 %v67
    %109 = vmatprep.subr.mxu0 0.0
    %110 = vmatpush1.msra.mxu0 %v66
    %111 = vmatprep.subr.mxu0 0.0
    %112 = vmatpush2.msra.mxu0 0.0
    %113 = vmatprep.subr.mxu0 0.0
    %114 = vmatpush2.msra.mxu0 0.0
    %115 = vmatprep.subr.mxu0 0.0
    %116 = vmatpush2.msra.mxu0 0.0
    %117 = vmatprep.subr.mxu0 0.0
    %118 = vmatpush2.msra.mxu0 0.0
    %119 = vmatprep.subr.mxu0 0.0
    %120 = vmatpush2.msra.mxu0 0.0
    %121 = vmatprep.subr.mxu0 0.0
    %122 = vmatpush2.msra.mxu0 0.0
    %123 = vmatprep.subr.mxu0 0.0
    %124 = vmatpush2.msra.mxu0 0.0
    %125 = vmatprep.subr.mxu0 0.0
    %126 = vmatpush2.msra.mxu0 0.0
    %127 = vmatprep.subr.mxu0 0.0
    %128 = vmatpush2.msra.mxu0 0.0
    %129 = vmatprep.subr.mxu0 0.0
    %130 = vmatpush2.msra.mxu0 0.0
    %131 = vmatprep.subr.mxu0 0.0
    %132 = vmatpush2.msra.mxu0 0.0
    %133 = vmatprep.subr.mxu0 0.0
    %134 = vmatpush2.msra.mxu0 0.0
    %135 = vmatprep.subr.mxu0 0.0
    %136 = vmatpush2.msra.mxu0 0.0
    %137 = vmatprep.subr.mxu0 0.0
    %138 = vmatpush2.msra.mxu0 0.0
    %139 = vmatprep.subr.mxu0 0.0
    %140 = vmatpush2.msra.mxu0 0.0
    %141 = vmatprep.subr.mxu0 0.0
    %142 = vmatpush2.msra.mxu0 0.0
    %143 = vmatprep.mubr.f32.mxu0 0.0
    %144 = vmatmul.mubr.f32.gmra.mxu0 %v77
    %v145 = vpop.f32.mrf.mxu0
    %v146 = vadd.f32 %v73, %v145
    %v147 = vpop.f32.mrf.mxu0
    %148 = vdwg.mxu0
    %v149 = vmul.f32 %v146, 0.01
    %v150 = vmax.f32 %v146, %v149
    %v151 = vld [vmem:[#allocation6] sm:$0xff]
    %v152 = vld [vmem:[#allocation6 + $0x8] sm:$0xff]
    %v153 = vld [vmem:[#allocation6 + $0x10] sm:$0xff]
    %v154 = vld [vmem:[#allocation6 + $0x18] sm:$0xff]
    %v155 = vld [vmem:[#allocation6 + $0x20] sm:$0xff]
    %v156 = vld [vmem:[#allocation6 + $0x28] sm:$0xff]
    %v157 = vld [vmem:[#allocation6 + $0x30] sm:$0xff]
    %v158 = vld [vmem:[#allocation6 + $0x38] sm:$0xff]
    %v159 = vld [vmem:[#allocation6 + $0x40] sm:$0xff]
    %v160 = vld [vmem:[#allocation6 + $0x48] sm:$0xff]
    %v161 = vld [vmem:[#allocation6 + $0x50] sm:$0xff]
    %v162 = vld [vmem:[#allocation6 + $0x58] sm:$0xff]
    %v163 = vld [vmem:[#allocation6 + $0x60] sm:$0xff]
    %v164 = vld [vmem:[#allocation6 + $0x68] sm:$0xff]
    %v165 = vld [vmem:[#allocation6 + $0x70] sm:$0xff]
    %v166 = vld [vmem:[#allocation6 + $0x78] sm:$0xff]
    %v167 = vld [vmem:[%s4] sm:$0x1]
    %v169 = vlaneseq
    %v170 = vshrl.u32 %v169, 7
    %v171 = vsub.s32 0, %v170
    %v172 = vrot.slane %v167, %v171
    %174 = vmatprep.subr.mxu0 0.0
    %175 = vmatpush1.msra.mxu0 %v166
    %176 = vmatprep.subr.mxu0 0.0
    %177 = vmatpush1.msra.mxu0 %v165
    %178 = vmatprep.subr.mxu0 0.0
    %179 = vmatpush1.msra.mxu0 %v164
    %180 = vmatprep.subr.mxu0 0.0
    %181 = vmatpush1.msra.mxu0 %v163
    %182 = vmatprep.subr.mxu0 0.0
    %183 = vmatpush1.msra.mxu0 %v162
    %184 = vmatprep.subr.mxu0 0.0
    %185 = vmatpush1.msra.mxu0 %v161
    %186 = vmatprep.subr.mxu0 0.0
    %187 = vmatpush1.msra.mxu0 %v160
    %188 = vmatprep.subr.mxu0 0.0
    %189 = vmatpush1.msra.mxu0 %v159
    %190 = vmatprep.subr.mxu0 0.0
    %191 = vmatpush1.msra.mxu0 %v158
    %192 = vmatprep.subr.mxu0 0.0
    %193 = vmatpush1.msra.mxu0 %v157
    %194 = vmatprep.subr.mxu0 0.0
    %195 = vmatpush1.msra.mxu0 %v156
    %196 = vmatprep.subr.mxu0 0.0
    %197 = vmatpush1.msra.mxu0 %v155
    %198 = vmatprep.subr.mxu0 0.0
    %199 = vmatpush1.msra.mxu0 %v154
    %200 = vmatprep.subr.mxu0 0.0
    %201 = vmatpush1.msra.mxu0 %v153
    %202 = vmatprep.subr.mxu0 0.0
    %203 = vmatpush1.msra.mxu0 %v152
    %204 = vmatprep.subr.mxu0 0.0
    %205 = vmatpush1.msra.mxu0 %v151
    %206 = vmatprep.subr.mxu0 0.0
    %207 = vmatpush2.msra.mxu0 0.0
    %208 = vmatprep.subr.mxu0 0.0
    %209 = vmatpush2.msra.mxu0 0.0
    %210 = vmatprep.subr.mxu0 0.0
    %211 = vmatpush2.msra.mxu0 0.0
    %212 = vmatprep.subr.mxu0 0.0
    %213 = vmatpush2.msra.mxu0 0.0
    %214 = vmatprep.subr.mxu0 0.0
    %215 = vmatpush2.msra.mxu0 0.0
    %216 = vmatprep.subr.mxu0 0.0
    %217 = vmatpush2.msra.mxu0 0.0
    %218 = vmatprep.subr.mxu0 0.0
    %219 = vmatpush2.msra.mxu0 0.0
    %220 = vmatprep.subr.mxu0 0.0
    %221 = vmatpush2.msra.mxu0 0.0
    %222 = vmatprep.subr.mxu0 0.0
    %223 = vmatpush2.msra.mxu0 0.0
    %224 = vmatprep.subr.mxu0 0.0
    %225 = vmatpush2.msra.mxu0 0.0
    %226 = vmatprep.subr.mxu0 0.0
    %227 = vmatpush2.msra.mxu0 0.0
    %228 = vmatprep.subr.mxu0 0.0
    %229 = vmatpush2.msra.mxu0 0.0
    %230 = vmatprep.subr.mxu0 0.0
    %231 = vmatpush2.msra.mxu0 0.0
    %232 = vmatprep.subr.mxu0 0.0
    %233 = vmatpush2.msra.mxu0 0.0
    %234 = vmatprep.subr.mxu0 0.0
    %235 = vmatpush2.msra.mxu0 0.0
    %236 = vmatprep.subr.mxu0 0.0
    %237 = vmatpush2.msra.mxu0 0.0
    %238 = vmatprep.mubr.f32.mxu0 0.0
    %239 = vmatmul.mubr.f32.gmra.mxu0 %v150
    %v240 = vpop.f32.mrf.mxu0
    %v241 = vadd.f32 %v172, %v240
    %v242 = vpop.f32.mrf.mxu0
    %243 = vdwg.mxu0
    %v244 = vmul.f32 %v241, 0.01
    %v245 = vmax.f32 %v241, %v244
    %v246 = vld [vmem:[%s5] sm:$0x3]
    %v247 = vld [vmem:[%s6] sm:$0x1]
    %v248 = vlaneseq
    %v249 = vshrl.u32 %v248, 7
    %v250 = vsub.s32 0, %v249
    %v251 = vrot.slane %v246, %v250
    %v252 = vmul.f32 %v245, %v251
    %253 = vadd.xlane.f32.xlu0 %v252
    %v254 = vpop.xlane.xlu0 %253
    %v256 = vlaneseq
    %v257 = vshrl.u32 %v256, 7
    %v258 = vsub.s32 0, %v257
    %v259 = vrot.slane %v247, %v258
    %v261 = vadd.f32 %v254, %v259
    %vm262 = vcmask 7168
    %263 = vst.msk [vmem:[%s7] sm:$0xff] %vm262, %v261
    %v264 = vlaneseq
    %v265 = vshrl.u32 %v264, 7
    %v266 = vsub.s32 1, %v265
    %v267 = vrot.slane %v246, %v266
    %v268 = vmul.f32 %v245, %v267
    %269 = vadd.xlane.f32.xlu0 %v268
    %v270 = vpop.xlane.xlu0 %269
    %v271 = vadd.f32 %v270, %v259
    %vm272 = vcmask 15368
    %273 = vst.msk [vmem:[%s7] sm:$0xff] %vm272, %v271
    // Predicated region
    $region42: #{tpu_custom_call.1} parent=1 // pred_check
      _
    $region43: #{tpu_custom_call.1} parent=1 // pred_check_branch
      %275 = sbr.rel (0) target = $region45
    $region44: #{tpu_custom_call.1} parent=1 // pred_region
      _
    $region45: #{tpu_custom_call.1} parent=1 // pred_fallthru
      _
    // Predicated region
    $region46: #{tpu_custom_call.1} parent=1 // pred_check
      _
    $region47: #{tpu_custom_call.1} parent=1 // pred_check_branch
      %277 = sbr.rel (0) target = $region49
    $region48: #{tpu_custom_call.1} parent=1 // pred_region
      _
    $region49: #{tpu_custom_call.1} parent=1 // pred_fallthru
      _
    %278 = vsyncpa [#allocation3], 1
    %279 = vsyncpa [#allocation5], 1

</llo_original>
